<compile_context>
chip_gen: v5e
topology: v5e:2x2
jax: 0.10.0
libtpu: 0.0.40
codegen_flags: <defaults>
</compile_context>

<pallas_src>
import functools

import jax
import jax.numpy as jnp
import numpy as np
from jax.experimental import pallas as pl
from jax.experimental.pallas import tpu as pltpu

LANE = 128
CHUNK_TARGET_BYTES = 256 * 1024     # per sub-chunk slice processed inside the tile loop


def _round_up(a, b):
    return ((a + b - 1) // b) * b


def _hw_config():
    """(num_shards, tile_bytes, vmem_limit_bytes) keyed off the local TPU generation."""
    kind = ""
    try:
        dev = jax.devices()[0]
        if dev.platform == "tpu":
            kind = (getattr(dev, "device_kind", "") or "").lower()
    except Exception:
        pass
    if "v7" in kind or "7x" in kind:
        # 2 TensorCores/chip split the stream; 64 MiB VMEM per TC (32 MiB scoped default).
        return 2, 8 << 20, 32 << 20
    if "v6" in kind:
        return 1, 8 << 20, 64 << 20       # 128 MiB physical VMEM; raise scoped limit for headroom
    if "v5 lite" in kind or "v5lite" in kind or "v5e" in kind:
        return 1, 4 << 20, None           # 2 x 4 MiB buffers fit the 16 MiB scoped-VMEM default
    if kind:
        return 1, 4 << 20, None           # other / older TPU: conservative
    return 1, 2 << 20, None               # unknown backend (e.g. interpret mode): tiny & safe


def _hamming_values(x, symmetric, is_int):
    """Per-element loss == lerp(hms[floor], hms[ceil], frac), table in closed form."""
    if is_int:
        # Integer fast path: frac == 0, single 8-bit SWAR popcount, no f32 lerp.
        v = x.astype(jnp.int32)
        if symmetric:
            v = v + 128
        v = jnp.clip(v, 0, 255)
        if symmetric:
            v = jnp.bitwise_xor(v, 0x80)
        v = v - ((v >> 1) & 0x55)
        v = (v & 0x33) + ((v >> 2) & 0x33)
        v = (v + (v >> 4)) & 0x0F
        return v.astype(jnp.float32)

    x = x.astype(jnp.float32)
    if symmetric:
        x = x + 128.0                      # preceding non-inplace .clip() is a no-op in torch
    x = jnp.clip(x, 0.0, 255.0)
    low_f = jnp.floor(x)                   # already >= 0 after the clip
    frac = x - low_f
    low = low_f.astype(jnp.int32)
    # Pack low (bits 0..15) and high = low + 1 (bits 16..31); one widened SWAR
    # popcount covers both table lookups.  Dropping ceil() is exact: frac == 0
    # whenever ceil == floor, so the x == 255 edge (popcount of 256 is garbage)
    # contributes nothing through the lerp.
    p = low | ((low + 1) << 16)
    if symmetric:
        p = jnp.bitwise_xor(p, 0x00800080)
    p = p - ((p >> 1) & 0x00550055)
    p = (p & 0x00330033) + ((p >> 2) & 0x00330033)
    p = (p + (p >> 4)) & 0x000F000F
    low_i = p & 0xFF
    low_val = low_i.astype(jnp.float32)
    delta = ((p >> 16) - low_i).astype(jnp.float32)
    return low_val + frac * delta          # torch.lerp(low_val, high_val, frac)


def _hamming_kernel(x_ref, o_ref, *, symmetric, is_int, tile_rows, chunk_rows,
                    n_chunks, steps_per_shard, total_rows, need_mask):
    s = pl.program_id(0)    # shard axis ("parallel": split across TensorCores on v7x)
    i = pl.program_id(1)    # reduction steps within the shard ("arbitrary")

    @pl.when(i == 0)
    def _():
        o_ref[...] = jnp.zeros_like(o_ref)

    row_base = (s * steps_per_shard + i) * tile_rows

    def tile_sum(masked):
        # Walk the tile in ~256 KiB sub-chunks: intermediates stay small so the
        # 4-8 MiB input tiles never imply tile-sized f32 temporaries in VMEM.
        def body(c, acc):
            r0 = pl.multiple_of(c * chunk_rows, chunk_rows)
            ret = _hamming_values(x_ref[pl.ds(r0, chunk_rows), :], symmetric, is_int)
            if masked:
                # Zero rows past the true end of the array (ragged edge / clamped
                # duplicate blocks).  Must stay jnp.where (select), NOT ret * mask:
                # the garbage rows may hold NaN/Inf from stale VMEM.
                rid = row_base + r0 + jax.lax.broadcasted_iota(
                    jnp.int32, (chunk_rows, LANE), 0)
                ret = jnp.where(rid < total_rows, ret, 0.0)
            # (chunk_rows, 128) -> (8, 128) partial sums: pure VPU adds, no cross-lane work.
            return acc + jnp.sum(ret.reshape(chunk_rows // 8, 8, LANE), axis=0)

        return jax.lax.fori_loop(0, n_chunks, body,
                                 jnp.zeros((8, LANE), jnp.float32))

    if need_mask:
        is_edge = row_base + tile_rows > total_rows

        @pl.when(jnp.logical_not(is_edge))      # steady-state tiles: no masking cost
        def _():
            o_ref[...] += tile_sum(False).reshape(1, 8, LANE)

        @pl.when(is_edge)                       # last partial tile / clamped duplicates only
        def _():
            o_ref[...] += tile_sum(True).reshape(1, 8, LANE)
    else:
        o_ref[...] += tile_sum(False).reshape(1, 8, LANE)


def hamming_loss(x, reduce="sum", symmetric=True):
    n = x.size
    is_int = bool(jnp.issubdtype(x.dtype, jnp.integer))
    xf = jnp.ravel(x)                       # free for contiguous inputs
    n_main = (n // LANE) * LANE
    total = jnp.zeros((), jnp.float32)

    if n_main > 0:
        rows = n_main // LANE
        x2 = xf[:n_main].reshape(rows, LANE)    # identity slice when n % 128 == 0; native dtype
        itemsize = x2.dtype.itemsize
        sub = max(8, 32 // max(itemsize, 1))    # sublane multiple: f32 -> 8, bf16 -> 16, int8 -> 32

        hw_shards, tile_bytes, vmem_limit = _hw_config()

        chunk_rows = max(sub, (CHUNK_TARGET_BYTES // (LANE * itemsize)) // sub * sub)
        if rows <= chunk_rows:
            tile_rows = _round_up(rows, sub)
            chunk_rows = tile_rows
        else:
            max_tile_rows = max(chunk_rows,
                                (tile_bytes // (LANE * itemsize)) // chunk_rows * chunk_rows)
            tile_rows = min(max_tile_rows, _round_up(rows, chunk_rows))
        n_chunks = tile_rows // chunk_rows

        total_steps = pl.cdiv(rows, tile_rows)
        num_shards = hw_shards if total_steps >= hw_shards else 1
        steps_per_shard = pl.cdiv(total_steps, num_shards)
        need_mask = (rows % tile_rows != 0) or (num_shards * steps_per_shard != total_steps)

        kernel = functools.partial(
            _hamming_kernel, symmetric=symmetric, is_int=is_int,
            tile_rows=tile_rows, chunk_rows=chunk_rows, n_chunks=n_chunks,
            steps_per_shard=steps_per_shard, total_rows=rows, need_mask=need_mask)

        cp_kwargs = dict(dimension_semantics=("parallel", "arbitrary"))
        if vmem_limit is not None:
            cp_kwargs["vmem_limit_bytes"] = int(vmem_limit)

        out = pl.pallas_call(
            kernel,
            out_shape=jax.ShapeDtypeStruct((num_shards, 8, LANE), jnp.float32),
            grid_spec=pltpu.PrefetchScalarGridSpec(
                num_scalar_prefetch=0,
                grid=(num_shards, steps_per_shard),
                in_specs=[pl.BlockSpec(
                    (tile_rows, LANE),
                    lambda s, i: (jnp.minimum(s * steps_per_shard + i,
                                              total_steps - 1), 0))],
                out_specs=pl.BlockSpec((1, 8, LANE), lambda s, i: (s, 0, 0)),
            ),
            compiler_params=pltpu.CompilerParams(**cp_kwargs),
        )(x2)
        total = total + jnp.sum(out)

    if n - n_main > 0:
        # < 128 leftover elements: negligible work, handled in plain jnp.
        total = total + jnp.sum(_hamming_values(xf[n_main:], symmetric, is_int))

    if reduce == "sum":
        return total
    return total / jnp.float32(n)


def _reference(x, reduce="sum", symmetric=True):
    # Pure-JAX port of the torch forward (explicit 256-entry table gather).
    if symmetric:
        nums = list(range(-128, 128))
    else:
        nums = list(range(0, 256))
    hms = jnp.asarray([bin(i & 0xFF).count("1") for i in nums], jnp.float32)
    x = jnp.asarray(x, jnp.float32)
    if symmetric:
        x = x + 128.0
    x = jnp.clip(x, 0.0, 255.0)
    low = jnp.clip(jnp.floor(x).astype(jnp.int32), 0, None)
    high = jnp.clip(jnp.ceil(x).astype(jnp.int32), None, 255)
    frac = x - low.astype(jnp.float32)
    ret = hms[low] + frac * (hms[high] - hms[low])
    return ret.sum() if reduce == "sum" else ret.mean()


if __name__ == "__main__":
    loss = jax.jit(hamming_loss, static_argnames=("reduce", "symmetric"))

    key = jax.random.PRNGKey(0)
    k1, k2, k3, k4 = jax.random.split(key, 4)

    # Primary input: NCHW, values roughly spanning the symmetric int8 range.
    x = jax.random.uniform(k1, (2, 4, 16, 16), jnp.float32, minval=-140.0, maxval=140.0)
    # Ragged size (not a multiple of 128): exercises pl.when edge mask + jnp tail.
    x_ragged = jax.random.uniform(k2, (3, 5, 7, 11), jnp.float32, minval=-140.0, maxval=140.0)
    # Multi-chunk case with clipping at both ends.
    x_big = jax.random.uniform(k3, (2, 3, 256, 384), jnp.float32, minval=-10.0, maxval=300.0)
    # Exact edge values (255, 254.5, 0, out-of-range pre-clip) for the high = low + 1 path.
    edge_vals = jnp.array([255.0, 254.5, 254.0, 128.0, 127.5, 1.0, 0.5, 0.0,
                           -0.5, -129.0, 300.0, 255.0, 64.25, 191.75, 2.0, 253.0],
                          jnp.float32)
    x_edge = jnp.tile(edge_vals, 32).reshape(4, 128)      # 512 elements -> kernel path
    # Integer fast path (quantized input).
    x_int = jax.random.randint(k4, (4, 3, 16, 16), -128, 128).astype(jnp.int8)

    cases = [
        (x, "sum", True), (x, "mean", True), (x, "sum", False),
        (x_ragged, "sum", True), (x_ragged, "mean", False),
        (x_big, "sum", True), (x_big, "mean", True),
        (x_edge, "sum", False), (x_edge - 128.0, "sum", True),
        (x_int, "sum", True), (x_int, "mean", False),
    ]
    for xi, red, sym in cases:
        got = jax.block_until_ready(loss(xi, reduce=red, symmetric=sym))
        want = _reference(xi, reduce=red, symmetric=sym)
        np.testing.assert_allclose(np.asarray(got), np.asarray(want), rtol=1e-4, atol=1e-4)

    print("KERNEL_OK")
</pallas_src>

<mosaic_0001>
module attributes {stable_mosaic.version = 11 : i64} {
  func.func @_hamming_kernel(%arg0: i32, %arg1: i32, %arg2: memref<16x128xf32, #tpu.memory_space<vmem>>, %arg3: memref<1x8x128xf32, #tpu.memory_space<vmem>>) attributes {dimension_semantics = [#tpu.dimension_semantics<parallel>, #tpu.dimension_semantics<arbitrary>], iteration_bounds = array<i64: 1, 1>, scalar_prefetch = 0 : i64, scratch_operands = 0 : i64, tpu.core_type = #tpu.core_type<tc>, window_params = [{transform_indices = @transform_0, window_bounds = array<i64: 16, 128>}, {transform_indices = @transform_1, window_bounds = array<i64: 1, 8, 128>}]} {
    %c0_i32 = arith.constant 0 : i32
    %0 = arith.cmpi eq, %arg1, %c0_i32 : i32
    %1 = arith.extui %0 : i1 to i32
    %c0_i32_0 = arith.constant 0 : i32
    %2 = arith.cmpi ne, %1, %c0_i32_0 : i32
    scf.if %2 {
      %cst_17 = arith.constant 0.000000e+00 : f32
      %57 = vector.broadcast %cst_17 : f32 to vector<1x8x128xf32>
      %c0_18 = arith.constant 0 : index
      %c0_19 = arith.constant 0 : index
      %c0_20 = arith.constant 0 : index
      %58 = vector.load %arg3[%c0_18, %c0_19, %c0_20] : memref<1x8x128xf32, #tpu.memory_space<vmem>>, vector<1x8x128xf32>
      tpu.vector_store %arg3[%c0_18, %c0_19, %c0_20], %57 {strides = array<i32>} : memref<1x8x128xf32, #tpu.memory_space<vmem>>, vector<1x8x128xf32>,
    } else {
    }
    %c0 = arith.constant 0 : index
    %c0_1 = arith.constant 0 : index
    %c0_2 = arith.constant 0 : index
    %3 = vector.load %arg3[%c0, %c0_1, %c0_2] : memref<1x8x128xf32, #tpu.memory_space<vmem>>, vector<1x8x128xf32>
    %cst = arith.constant 0.000000e+00 : f32
    %4 = vector.broadcast %cst : f32 to vector<8x128xf32>
    %c0_i32_3 = arith.constant 0 : i32
    %c16_i32 = arith.constant 16 : i32
    %5 = arith.muli %c0_i32_3, %c16_i32 : i32
    %6 = tpu.assume_multiple %5, 16 : i32
    %7 = arith.index_cast %6 : i32 to index
    %c0_4 = arith.constant 0 : index
    %8 = vector.load %arg2[%7, %c0_4] : memref<16x128xf32, #tpu.memory_space<vmem>>, vector<16x128xf32>
    %cst_5 = arith.constant 1.280000e+02 : f32
    %9 = vector.broadcast %cst_5 : f32 to vector<16x128xf32>
    %10 = arith.addf %8, %9 : vector<16x128xf32>
    %cst_6 = arith.constant 0.000000e+00 : f32
    %cst_7 = arith.constant 2.550000e+02 : f32
    %11 = vector.broadcast %cst_6 : f32 to vector<16x128xf32>
    %12 = arith.maximumf %11, %10 : vector<16x128xf32>
    %13 = vector.broadcast %cst_7 : f32 to vector<16x128xf32>
    %14 = arith.minimumf %13, %12 : vector<16x128xf32>
    %15 = math.floor %14 : vector<16x128xf32>
    %16 = arith.subf %14, %15 : vector<16x128xf32>
    %17 = arith.fptosi %15 : vector<16x128xf32> to vector<16x128xi32>
    %c1_i32 = arith.constant 1 : i32
    %18 = vector.broadcast %c1_i32 : i32 to vector<16x128xi32>
    %19 = arith.addi %17, %18 : vector<16x128xi32>
    %c16_i32_8 = arith.constant 16 : i32
    %20 = vector.broadcast %c16_i32_8 : i32 to vector<16x128xi32>
    %21 = arith.shli %19, %20 : vector<16x128xi32>
    %22 = arith.ori %17, %21 : vector<16x128xi32>
    %c8388736_i32 = arith.constant 8388736 : i32
    %23 = vector.broadcast %c8388736_i32 : i32 to vector<16x128xi32>
    %24 = arith.xori %22, %23 : vector<16x128xi32>
    %c1_i32_9 = arith.constant 1 : i32
    %25 = vector.broadcast %c1_i32_9 : i32 to vector<16x128xi32>
    %26 = arith.shrsi %24, %25 : vector<16x128xi32>
    %c5570645_i32 = arith.constant 5570645 : i32
    %27 = vector.broadcast %c5570645_i32 : i32 to vector<16x128xi32>
    %28 = arith.andi %26, %27 : vector<16x128xi32>
    %29 = arith.subi %24, %28 : vector<16x128xi32>
    %c3342387_i32 = arith.constant 3342387 : i32
    %30 = vector.broadcast %c3342387_i32 : i32 to vector<16x128xi32>
    %31 = arith.andi %29, %30 : vector<16x128xi32>
    %c2_i32 = arith.constant 2 : i32
    %32 = vector.broadcast %c2_i32 : i32 to vector<16x128xi32>
    %33 = arith.shrsi %29, %32 : vector<16x128xi32>
    %c3342387_i32_10 = arith.constant 3342387 : i32
    %34 = vector.broadcast %c3342387_i32_10 : i32 to vector<16x128xi32>
    %35 = arith.andi %33, %34 : vector<16x128xi32>
    %36 = arith.addi %31, %35 : vector<16x128xi32>
    %c4_i32 = arith.constant 4 : i32
    %37 = vector.broadcast %c4_i32 : i32 to vector<16x128xi32>
    %38 = arith.shrsi %36, %37 : vector<16x128xi32>
    %39 = arith.addi %36, %38 : vector<16x128xi32>
    %c983055_i32 = arith.constant 983055 : i32
    %40 = vector.broadcast %c983055_i32 : i32 to vector<16x128xi32>
    %41 = arith.andi %39, %40 : vector<16x128xi32>
    %c255_i32 = arith.constant 255 : i32
    %42 = vector.broadcast %c255_i32 : i32 to vector<16x128xi32>
    %43 = arith.andi %41, %42 : vector<16x128xi32>
    %44 = arith.sitofp %43 : vector<16x128xi32> to vector<16x128xf32>
    %c16_i32_11 = arith.constant 16 : i32
    %45 = vector.broadcast %c16_i32_11 : i32 to vector<16x128xi32>
    %46 = arith.shrsi %41, %45 : vector<16x128xi32>
    %47 = arith.subi %46, %43 : vector<16x128xi32>
    %48 = arith.sitofp %47 : vector<16x128xi32> to vector<16x128xf32>
    %49 = arith.mulf %16, %48 : vector<16x128xf32>
    %50 = arith.addf %44, %49 : vector<16x128xf32>
    %51 = vector.shape_cast %50 : vector<16x128xf32> to vector<2x8x128xf32>
    %cst_12 = arith.constant dense<0.000000e+00> : vector<8x128xf32>
    %52 = vector.multi_reduction <add>, %51, %cst_12 [0] : vector<2x8x128xf32> to vector<8x128xf32>
    %53 = arith.addf %4, %52 : vector<8x128xf32>
    %c1_i32_13 = arith.constant 1 : i32
    %54 = vector.shape_cast %53 : vector<8x128xf32> to vector<1x8x128xf32>
    %55 = arith.addf %3, %54 : vector<1x8x128xf32>
    %c0_14 = arith.constant 0 : index
    %c0_15 = arith.constant 0 : index
    %c0_16 = arith.constant 0 : index
    %56 = vector.load %arg3[%c0_14, %c0_15, %c0_16] : memref<1x8x128xf32, #tpu.memory_space<vmem>>, vector<1x8x128xf32>
    tpu.vector_store %arg3[%c0_14, %c0_15, %c0_16], %55 {strides = array<i32>} : memref<1x8x128xf32, #tpu.memory_space<vmem>>, vector<1x8x128xf32>,
    return
  }
  func.func @transform_0(%arg0: i32, %arg1: i32) -> (i32, i32) {
    %c1_i32 = arith.constant 1 : i32
    %0 = arith.muli %arg0, %c1_i32 : i32
    %1 = arith.addi %0, %arg1 : i32
    %c0_i32 = arith.constant 0 : i32
    %2 = arith.minsi %1, %c0_i32 : i32
    %c0_i32_0 = arith.constant 0 : i32
    %c0_i32_1 = arith.constant 0 : i32
    return %2, %c0_i32_0 : i32, i32
  }
  func.func @transform_1(%arg0: i32, %arg1: i32) -> (i32, i32, i32) {
    %c0_i32 = arith.constant 0 : i32
    %c0_i32_0 = arith.constant 0 : i32
    %c0_i32_1 = arith.constant 0 : i32
    return %arg0, %c0_i32, %c0_i32_0 : i32, i32, i32
  }
}

</mosaic_0001>

<llo_original>
// kernel: hamming_loss.1
$region0: #{hamming_loss.1}
  #allocation0 [shape = 'u32[]', space=smem, size = 0x4, offset = 0x4, fixed_abs, tag = 'smem constant byte address 0x4 - core index']
  #allocation1 [shape = 'u32[72,128]{1,0:T(1,128)}', space=vmem, size = 0x9000, scoped, tag = 'internal scratch']
  %s0 = inlined_call_operand.vmem [shape: f32[16,128], index: 0, kind: input, shape index: {}]
  %s1 = inlined_call_operand.vmem [shape: f32[1,8,128], index: 1, kind: output, shape index: {}]
  %s2 = sld [smem:[#allocation0]]
  $region18: #{hamming_loss.1} parent=0
    _
  %s4 = ssub.s32 1, %s2
  %s5 = scalar_select 0, %s4, %s2
  // Predicated region
  $region2: #{hamming_loss.1} parent=0 // pred_check
    _
  $region3: #{hamming_loss.1} parent=0 // pred_check_branch
    %7 = sbr.rel (0) target = $region5
  $region4: #{hamming_loss.1} parent=0 // pred_region
    %s8 = sadd.s32 0, 0
    %p9 = scmp.lt.s32.totalorder %s8, 0
    %s10 = scalar_select %p9, %s8, 0
    %s11 = smul.u32 2, %s10
    %p12 = scmp.lt.s32.totalorder %s11, 1
    %s13 = scalar_select %p12, %s11, 1
    %s14 = smul.addr %s13, 8
    %s15 = scalar_lea.vmem %s0, %s14
    %s16 = sadd.s32 0, 0
    %p17 = scmp.lt.s32.totalorder %s16, 0
    %s18 = scalar_select %p17, %s16, 0
    %s19 = smul.u32 2, %s18
  $region5: #{hamming_loss.1} parent=0 // pred_fallthru
    _
  %s20 = sadd.s32 0, 0
  %p21 = scmp.lt.s32.totalorder %s20, 0
  %s22 = scalar_select %p21, %s20, 0
  %s23 = smul.u32 2, %s22
  %p24 = scmp.lt.s32.totalorder %s23, 1
  %s25 = scalar_select %p24, %s23, 1
  %s26 = smul.addr %s25, 8
  %s27 = scalar_lea.vmem %s0, %s26
  %s28 = sadd.s32 0, 0
  %p29 = scmp.lt.s32.totalorder %s28, 0
  %s30 = scalar_select %p29, %s28, 0
  %s31 = smul.u32 2, %s30
  %p32 = scmp.lt.s32.totalorder %s31, 1
  %s33 = scalar_select %p32, %s31, 1
  %s34 = smul.addr %s33, 8
  %s35 = scalar_lea.vmem %s0, %s34
  %s36 = sadd.s32 0, 0
  %p37 = scmp.lt.s32.totalorder %s36, 0
  %s38 = scalar_select %p37, %s36, 0
  %s39 = smul.u32 2, %s38
  %p40 = scmp.eq.s32.totalorder 0, 0
  // Predicated region
  $region6: #{hamming_loss.1} parent=0 // pred_check
    %p41 = pneg %p40
  $region7: #{hamming_loss.1} parent=0 // pred_check_branch
    %43 = sbr.rel (%p41) target = $region9
  $region8: #{hamming_loss.1} parent=0 // pred_region
    %44 = vst [vmem:[%s1] sm:$0xff] 0.0
  $region9: #{hamming_loss.1} parent=0 // pred_fallthru
    _
  %v45 = vld [vmem:[%s1] sm:$0xff]
  %v46 = vld [vmem:[%s35] sm:$0xff]
  %v47 = vld [vmem:[%s35 + $0x8] sm:$0xff]
  %v48 = vadd.f32 %v46, 128.0
  %v49 = vadd.f32 %v47, 128.0
  %v50 = vmax.f32 %v48, 0.0
  %v51 = vmax.f32 %v49, 0.0
  %v52 = vmin.f32 %v50, 255.0
  %v53 = vmin.f32 %v51, 255.0
  %v54 = vfloor.f32 %v52
  %v55 = vfloor.f32 %v53
  %v56 = vsub.f32 %v52, %v54
  %v57 = vsub.f32 %v53, %v55
  %v58 = vcvt.f32.s32.to.zero.pseudo %v54
  %v59 = vcvt.f32.s32.to.zero.pseudo %v55
  %v60 = vadd.s32 %v58, 1
  %v61 = vadd.s32 %v59, 1
  %v62 = vshll.u32 %v60, 16
  %v63 = vshll.u32 %v61, 16
  %v64 = vor.u32 %v58, %v62
  %v65 = vor.u32 %v59, %v63
  %v66 = vxor.u32 %v64, 8388736
  %v67 = vxor.u32 %v65, 8388736
  %v68 = vshra.s32 %v66, 1
  %v69 = vshra.s32 %v67, 1
  %v70 = vand.u32 %v68, 5570645
  %v71 = vand.u32 %v69, 5570645
  %v72 = vsub.s32 %v66, %v70
  %v73 = vsub.s32 %v67, %v71
  %v74 = vand.u32 %v72, 3342387
  %v75 = vand.u32 %v73, 3342387
  %v76 = vshra.s32 %v72, 2
  %v77 = vshra.s32 %v73, 2
  %v78 = vand.u32 %v76, 3342387
  %v79 = vand.u32 %v77, 3342387
  %v80 = vadd.s32 %v74, %v78
  %v81 = vadd.s32 %v75, %v79
  %v82 = vshra.s32 %v80, 4
  %v83 = vshra.s32 %v81, 4
  %v84 = vadd.s32 %v80, %v82
  %v85 = vadd.s32 %v81, %v83
  %v86 = vand.u32 %v84, 983055
  %v87 = vand.u32 %v85, 983055
  %v88 = vand.u32 %v86, 255
  %v89 = vand.u32 %v87, 255
  %v90 = vcvt.s32.f32 %v88
  %v91 = vcvt.s32.f32 %v89
  %v92 = vshra.s32 %v86, 16
  %v93 = vshra.s32 %v87, 16
  %v94 = vsub.s32 %v92, %v88
  %v95 = vsub.s32 %v93, %v89
  %v96 = vcvt.s32.f32 %v94
  %v97 = vcvt.s32.f32 %v95
  %v98 = vmul.f32 %v56, %v96
  %v99 = vmul.f32 %v57, %v97
  %v100 = vadd.f32 %v90, %v98
  %v101 = vadd.f32 %v91, %v99
  %v102 = vadd.f32 %v100, %v101
  %v103 = vadd.f32 %v102, 0.0
  %v104 = vadd.f32 %v45, %v103
  %105 = vst [vmem:[%s1] sm:$0xff] %v104
  // Predicated region
  $region10: #{hamming_loss.1} parent=0 // pred_check
    _
  $region11: #{hamming_loss.1} parent=0 // pred_check_branch
    %107 = sbr.rel (0) target = $region13
  $region12: #{hamming_loss.1} parent=0 // pred_region
    _
  $region13: #{hamming_loss.1} parent=0 // pred_fallthru
    _
  // Predicated region
  $region14: #{hamming_loss.1} parent=0 // pred_check
    _
  $region15: #{hamming_loss.1} parent=0 // pred_check_branch
    %109 = sbr.rel (0) target = $region17
  $region16: #{hamming_loss.1} parent=0 // pred_region
    _
  $region17: #{hamming_loss.1} parent=0 // pred_fallthru
    _

</llo_original>
